<compile_context>
chip_gen: v6e
topology: v6e:2x2x1
jax: 0.10.0
libtpu: 0.0.40
codegen_flags: <defaults>
</compile_context>

<pallas_src>
import numpy as np
import jax
import jax.numpy as jnp
from jax.experimental import pallas as pl
from jax.experimental.pallas import tpu as pltpu


# ----------------------------------------------------------------------------- helpers
_MAX_TILE_L = 4096                     # lane-dense tile cap along L (multiple of 128)
_VMEM_LIMIT = 32 * 1024 * 1024         # comfortable on v7x (64 MiB physical) and v5e/v6e


def _choose_tile_l(L, max_tile=_MAX_TILE_L):
    """Tile along the (lane-dense) L axis.

    If L fits in one tile we use the full dim (always a legal block shape -> no
    padding, no ragged handling).  Otherwise use a 128-aligned tile and let Pallas
    mask the ragged final block — no jnp.pad / output-slice HBM round-trips.
    """
    if L <= max_tile:
        return L, 1
    return max_tile, -(-L // max_tile)


def _compiler_params(n_axes):
    return pltpu.CompilerParams(
        dimension_semantics=("parallel",) * n_axes,
        vmem_limit_bytes=_VMEM_LIMIT,
    )


# ----------------------------------------------------------------------------- kernels
def _pw_conv_kernel(x_ref, w_ref, o_ref):
    # x: (C_in, T) bf16, w: (C_out, C_in) bf16 -> o: (C_out, T)
    o_ref[...] = jnp.dot(
        w_ref[...], x_ref[...], preferred_element_type=jnp.float32
    ).astype(o_ref.dtype)


def _merge_gated_kernel(a_ref, b_ref, w_ref, bias_ref, o_ref):
    # Fused overlap-add + gated 1x1 convs:
    #   x  = inp1 + inp2                              (bf16, each read once per tile)
    #   og = [W_out ; W_gate] @ x + [b_out ; b_gate]  (single MXU pass, f32 accumulate)
    #   o  = tanh(og_out) * sigmoid(og_gate)          (f32 activations)
    x = a_ref[...] + b_ref[...]                                           # (F, T)
    og = jnp.dot(w_ref[...], x, preferred_element_type=jnp.float32)
    og = og + bias_ref[...]                                               # (2C, T) f32
    c = og.shape[0] // 2
    o_ref[...] = (jnp.tanh(og[:c, :]) * jax.nn.sigmoid(og[c:, :])).astype(o_ref.dtype)


# ----------------------------------------------------------------------------- wrappers
def pointwise_conv1d(x_bcl, w2d):
    """1x1 Conv1d, no bias, NCW layout: y[b] = w2d @ x[b].
    x_bcl: (B, C_in, L), w2d: (C_out, C_in) -> (B, C_out, L)."""
    B, C_in, L = x_bcl.shape
    C_out = w2d.shape[0]
    tile, grid_l = _choose_tile_l(L)
    return pl.pallas_call(
        _pw_conv_kernel,
        out_shape=jax.ShapeDtypeStruct((B, C_out, L), x_bcl.dtype),
        grid=(grid_l, B),                              # L tiles first (megacore split)
        in_specs=[
            pl.BlockSpec((None, C_in, tile), lambda l, b: (b, 0, l)),
            # tiny weight, constant block index -> stays resident in VMEM
            pl.BlockSpec((C_out, C_in), lambda l, b: (0, 0)),
        ],
        out_specs=pl.BlockSpec((None, C_out, tile), lambda l, b: (b, 0, l)),
        compiler_params=_compiler_params(2),
    )(x_bcl, w2d)


def merged_gated_conv1d(inp1, inp2, w_og, b_og, num_spk, out_dtype=jnp.float32):
    """Fused overlap-add + tanh(conv1x1(.)) * sigmoid(conv1x1(.)).

    inp1/inp2: (B, F, L) bf16 overlap-add operands, already trimmed to the output length.
    w_og:      (2*C_out, F) bf16 concatenated [output ; output_gate] weights.
    b_og:      (2*C_out, 1) f32 concatenated biases.
    Returns (B*num_spk, C_out, L) in out_dtype.

    The spk grid axis only indexes the OUTPUT; the input index_maps ignore it, so the
    num_spk copies are never materialized in HBM (spk is innermost -> the input VMEM
    block is simply reused between consecutive grid steps).
    """
    B, F, L = inp1.shape
    C2 = w_og.shape[0]
    C_out = C2 // 2
    tile, grid_l = _choose_tile_l(L)
    return pl.pallas_call(
        _merge_gated_kernel,
        out_shape=jax.ShapeDtypeStruct((B * num_spk, C_out, L), out_dtype),
        grid=(grid_l, B, num_spk),
        in_specs=[
            pl.BlockSpec((None, F, tile), lambda l, b, s: (b, 0, l)),
            pl.BlockSpec((None, F, tile), lambda l, b, s: (b, 0, l)),
            pl.BlockSpec((C2, F), lambda l, b, s: (0, 0)),
            pl.BlockSpec((C2, 1), lambda l, b, s: (0, 0)),
        ],
        out_specs=pl.BlockSpec((None, C_out, tile),
                               lambda l, b, s: (b * num_spk + s, 0, l)),
        compiler_params=_compiler_params(3),
    )(inp1, inp2, w_og, b_og)


# ----------------------------------------------------------------------------- module
class BFModuleJax:
    """JAX/Pallas port of BF_module (model_type='DPRNN' path)."""

    def __init__(self, input_dim, feature_dim, hidden_dim, output_dim,
                 num_spk=2, layer=4, segment_size=100, bidirectional=True,
                 model_type='DPRNN', rnn_type='LSTM', seed=42,
                 compute_dtype=jnp.bfloat16):
        assert model_type == 'DPRNN', "only the DPRNN path is implemented here"
        self.input_dim = input_dim
        self.feature_dim = feature_dim
        self.hidden_dim = hidden_dim
        self.output_dim = output_dim
        self.layer = layer
        self.segment_size = segment_size
        self.num_spk = num_spk
        self.model_type = model_type
        self.eps = 1e-8
        self.compute_dtype = compute_dtype

        k = jax.random.PRNGKey(seed)
        k_bn, k_wo, k_bo, k_wg, k_bg = jax.random.split(k, 5)
        s_bn = 1.0 / np.sqrt(input_dim)
        s_out = 1.0 / np.sqrt(feature_dim)
        # f32 master weights (Conv1d (C_out, C_in, 1) stored in matmul form (C_out, C_in))
        self.bn_weight = jax.random.normal(k_bn, (feature_dim, input_dim), jnp.float32) * s_bn
        self.out_weight = jax.random.normal(k_wo, (output_dim, feature_dim), jnp.float32) * s_out
        self.out_bias = jax.random.normal(k_bo, (output_dim,), jnp.float32) * s_out
        self.gate_weight = jax.random.normal(k_wg, (output_dim, feature_dim), jnp.float32) * s_out
        self.gate_bias = jax.random.normal(k_bg, (output_dim,), jnp.float32) * s_out

        # kernel-side parameter forms: bf16 streaming + concatenated output/gate weights
        self.bn_weight_c = self.bn_weight.astype(compute_dtype)
        self.out_gate_weight_c = jnp.concatenate(
            [self.out_weight, self.gate_weight], axis=0).astype(compute_dtype)
        self.out_gate_bias_c = jnp.concatenate(
            [self.out_bias, self.gate_bias], axis=0).reshape(2 * output_dim, 1)

    # --- segmentation helpers (exact PyTorch semantics; static shapes) --------
    def pad_segment(self, x, segment_size):
        B, D, L = x.shape
        stride = segment_size // 2
        rest = segment_size - (stride + L % segment_size) % segment_size
        if rest > 0:
            x = jnp.concatenate([x, jnp.zeros((B, D, rest), x.dtype)], axis=2)
        pad_aux = jnp.zeros((B, D, stride), x.dtype)
        x = jnp.concatenate([pad_aux, x, pad_aux], axis=2)
        return x, rest

    def split_feature(self, x, segment_size):
        x, rest = self.pad_segment(x, segment_size)
        B, D, L = x.shape
        stride = segment_size // 2
        seg1 = x[:, :, :-stride].reshape(B, D, -1, segment_size)
        seg2 = x[:, :, stride:].reshape(B, D, -1, segment_size)
        segments = jnp.concatenate([seg1, seg2], axis=3).reshape(B, D, -1, segment_size)
        segments = jnp.transpose(segments, (0, 1, 3, 2))
        return segments, rest

    # --- forward ---------------------------------------------------------------
    def forward(self, x, num_mic=None):
        # x: (batch, input_dim, seq_len); model_type == 'DPRNN' -> ch = 1
        batch, N, seq_len = x.shape
        ch = 1
        x = x.reshape(batch * ch, N, seq_len).astype(self.compute_dtype)

        enc_feature = pointwise_conv1d(x, self.bn_weight_c)              # (B, F, L) bf16
        enc_segments, enc_rest = self.split_feature(enc_feature, self.segment_size)

        # TODO(synk): DPRNN (stacked bi-LSTM separator) is an external module and is
        # replaced by an identity placeholder.  Because it is the identity, the num_spk
        # copies are never materialized — the fused kernel's spk grid axis simply
        # re-reads the shared features (revisit once a real separator is plugged in).
        sep = enc_segments                                               # (B, F, S, K)
        B, F, S, K = sep.shape
        stride = S // 2

        # merge_feature views (the two overlap-add operands). The add itself is fused
        # into the gated-conv kernel below, so the merged tensor never hits HBM.
        # TODO(synk): inp1/inp2 are still one XLA copy each; fully eliminating them
        # would need memory_space=pl.ANY + manual pl.ds DMAs with segment-aligned tiles.
        z = jnp.transpose(sep, (0, 1, 3, 2)).reshape(B, F, -1, 2 * S)
        out_len = (K // 2) * S - stride - enc_rest                       # == seq_len
        inp1 = z[:, :, :, :S].reshape(B, F, -1)[:, :, stride:stride + out_len]
        inp2 = z[:, :, :, S:].reshape(B, F, -1)[:, :, :out_len]

        bf = merged_gated_conv1d(inp1, inp2, self.out_gate_weight_c,
                                 self.out_gate_bias_c, self.num_spk)     # (B*spk, C, L) f32
        bf_filter = jnp.transpose(bf, (0, 2, 1)).reshape(
            batch, ch, self.num_spk, -1, self.output_dim)
        return bf_filter


# -----------------------------------------------------------------------------
if __name__ == "__main__":
    batch, input_dim, feature_dim = 2, 16, 32
    hidden_dim, output_dim = 64, 16
    seq_len, segment_size, num_spk = 64, 16, 2

    key = jax.random.PRNGKey(0)
    x = jax.random.normal(key, (batch, input_dim, seq_len), dtype=jnp.float32)

    model = BFModuleJax(input_dim, feature_dim, hidden_dim, output_dim,
                        num_spk=num_spk, layer=4, segment_size=segment_size)

    out = model.forward(x, num_mic=None)
    out = jax.block_until_ready(out)
    assert out.shape == (batch, 1, num_spk, seq_len, output_dim)

    # --- sanity checks vs plain-JAX references using the SAME precision policy
    # --- (bf16 streaming, f32 accumulation) -------------------------------------
    cd = jnp.bfloat16

    # BN 1x1 conv kernel
    enc_pal = pointwise_conv1d(x.astype(cd), model.bn_weight_c)
    enc_ref = jnp.einsum("oc,bcl->bol", model.bn_weight_c, x.astype(cd),
                         preferred_element_type=jnp.float32).astype(cd)
    np.testing.assert_allclose(np.asarray(enc_pal, dtype=np.float32),
                               np.asarray(enc_ref, dtype=np.float32),
                               atol=2e-2, rtol=2e-2)

    # Full forward vs pure-JAX pipeline with the same identity placeholder separator
    def ref_forward(xin):
        xb = xin.astype(cd)
        enc = jnp.einsum("oc,bcl->bol", model.bn_weight_c, xb,
                         preferred_element_type=jnp.float32).astype(cd)
        segs, rest = model.split_feature(enc, segment_size)
        B, F, S, K = segs.shape
        o = jnp.broadcast_to(segs[:, None], (B, num_spk, F, S, K)).reshape(
            B * num_spk, F, S, K)
        o = jnp.transpose(o, (0, 1, 3, 2)).reshape(B * num_spk, F, -1, 2 * S)
        i1 = o[:, :, :, :S].reshape(B * num_spk, F, -1)[:, :, S // 2:]
        i2 = o[:, :, :, S:].reshape(B * num_spk, F, -1)[:, :, :-(S // 2)]
        merged = i1 + i2
        if rest > 0:
            merged = merged[:, :, :-rest]
        wo = model.out_weight.astype(cd)
        wg = model.gate_weight.astype(cd)
        oo = jnp.einsum("of,bfl->bol", wo, merged,
                        preferred_element_type=jnp.float32) + model.out_bias[None, :, None]
        gg = jnp.einsum("of,bfl->bol", wg, merged,
                        preferred_element_type=jnp.float32) + model.gate_bias[None, :, None]
        bf = jnp.tanh(oo) * jax.nn.sigmoid(gg)
        return jnp.transpose(bf, (0, 2, 1)).reshape(
            batch, 1, num_spk, -1, output_dim).astype(jnp.float32)

    ref = jax.block_until_ready(ref_forward(x))
    np.testing.assert_allclose(np.asarray(out), np.asarray(ref), atol=2e-2, rtol=2e-2)

    print("KERNEL_OK")
</pallas_src>

<mosaic_0001>
module attributes {stable_mosaic.version = 11 : i64} {
  func.func @_pw_conv_kernel(%arg0: i32, %arg1: i32, %arg2: memref<1x16x64xbf16, #tpu.memory_space<vmem>>, %arg3: memref<32x16xbf16, #tpu.memory_space<vmem>>, %arg4: memref<1x32x64xbf16, #tpu.memory_space<vmem>>) attributes {dimension_semantics = [#tpu.dimension_semantics<parallel>, #tpu.dimension_semantics<parallel>], iteration_bounds = array<i64: 1, 2>, scalar_prefetch = 0 : i64, scratch_operands = 0 : i64, tpu.core_type = #tpu.core_type<tc>, window_params = [{transform_indices = @transform_0, window_bounds = array<i64: 1, 16, 64>}, {pipeline_mode = #tpu.pipeline_mode<synchronous>, transform_indices = @transform_1, window_bounds = array<i64: 32, 16>}, {transform_indices = @transform_2, window_bounds = array<i64: 1, 32, 64>}]} {
    %c0 = arith.constant 0 : index
    %c0_0 = arith.constant 0 : index
    %0 = vector.load %arg3[%c0, %c0_0] : memref<32x16xbf16, #tpu.memory_space<vmem>>, vector<32x16xbf16>
    %c0_1 = arith.constant 0 : index
    %c0_2 = arith.constant 0 : index
    %c0_3 = arith.constant 0 : index
    %1 = vector.load %arg2[%c0_1, %c0_2, %c0_3] : memref<1x16x64xbf16, #tpu.memory_space<vmem>>, vector<1x16x64xbf16>
    %2 = vector.shape_cast %1 : vector<1x16x64xbf16> to vector<16x64xbf16>
    %cst = arith.constant dense<0.000000e+00> : vector<32x64xf32>
    %3 = tpu.matmul %0, %2, %cst {dimension_numbers = #tpu.dot_dimension_numbers<[1], [0], [0], [1], [0, 0, 1, 1], [], []>} : vector<32x16xbf16>, vector<16x64xbf16>, vector<32x64xf32> -> vector<32x64xf32>
    %4 = arith.truncf %3 : vector<32x64xf32> to vector<32x64xbf16>
    %c0_4 = arith.constant 0 : index
    %c0_5 = arith.constant 0 : index
    %c0_6 = arith.constant 0 : index
    %5 = vector.load %arg4[%c0_4, %c0_5, %c0_6] : memref<1x32x64xbf16, #tpu.memory_space<vmem>>, vector<1x32x64xbf16>
    %6 = vector.shape_cast %5 : vector<1x32x64xbf16> to vector<32x64xbf16>
    %7 = vector.shape_cast %4 : vector<32x64xbf16> to vector<1x32x64xbf16>
    tpu.vector_store %arg4[%c0_4, %c0_5, %c0_6], %7 {strides = array<i32>} : memref<1x32x64xbf16, #tpu.memory_space<vmem>>, vector<1x32x64xbf16>,
    return
  }
  func.func @transform_0(%arg0: i32, %arg1: i32) -> (i32, i32, i32) {
    %c0_i32 = arith.constant 0 : i32
    %c0_i32_0 = arith.constant 0 : i32
    return %arg1, %c0_i32, %arg0 : i32, i32, i32
  }
  func.func @transform_1(%arg0: i32, %arg1: i32) -> (i32, i32) {
    %c0_i32 = arith.constant 0 : i32
    %c0_i32_0 = arith.constant 0 : i32
    %c0_i32_1 = arith.constant 0 : i32
    return %c0_i32, %c0_i32_0 : i32, i32
  }
  func.func @transform_2(%arg0: i32, %arg1: i32) -> (i32, i32, i32) {
    %c0_i32 = arith.constant 0 : i32
    %c0_i32_0 = arith.constant 0 : i32
    return %arg1, %c0_i32, %arg0 : i32, i32, i32
  }
}

</mosaic_0001>

<llo_original>
// kernel: tpu_custom_call.1
$region0: #{tpu_custom_call.1}
  #allocation0 [shape = 'u32[]', space=smem, size = 0x4, offset = 0x4, fixed_abs, tag = 'smem constant byte address 0x4 - core index']
  #allocation1 [shape = 'u32[144,128]{1,0:T(1,128)}', space=vmem, size = 0x12000, scoped, tag = 'internal scratch']
  %s0 = inlined_call_operand.vmem [shape: bf16[2,16,64], index: 0, kind: input, shape index: {}]
  %s1 = inlined_call_operand.vmem [shape: bf16[32,16], index: 1, kind: input, shape index: {}]
  %s2 = inlined_call_operand.hbm [shape: bf16[2,32,64], index: 2, kind: output, shape index: {}]
  %s3 = sld [smem:[#allocation0]]
  $region41: #{tpu_custom_call.1} parent=0
    _
  %s5 = ssub.s32 1, %s3
  %s6 = scalar_select 0, %s5, %s3
  $region1: #{tpu_custom_call.1} parent=0
    #allocation2 [shape = 'u8[16384]{0}', space=vmem, size = 0x4000, scoped, tag = 'output window, operand 0']
    #allocation3 [shape = 's32[2]{0}', space=sflag, size = 0x8, scoped, tag = 'scoped memory for tpu_custom_call.1']
    %7 = vsyncpa [#allocation3], 0
    %s8 = scalar_lea.sflag [#allocation3], 1
    %9 = vsyncpa %s8, 0
    loop: start=0, step=1, limit=4
    $region2: #{tpu_custom_call.1} parent=1 // loop_pre_header
      _
    $region3: #{tpu_custom_call.1} parent=1 // loop_header
      %s11 = sphi 0, %s15
      %p12 = scmp.ge.s32.totalorder %s11, 4
      %s18 = sphi 0, %s30
      %s19 = sphi 0, %s26
      %s20 = sphi 0, %s18
      %s21 = sphi 0, %s19
      %s22 = sphi 0, %s20
      %s23 = sphi 0, %s21
      %s35 = sphi 0, %s37
      %s38 = sphi 0, %s35
      %s39 = sphi 0, %s38
      %s55 = sphi 0, %s39
      %s59 = sphi 0, %s59
      %s61 = sphi 0, %s59
      %s62 = sphi 0, %s61
      %s76 = sphi 0, %s62
      %s84 = sphi 0, %s86
      %s87 = sphi 0, %s84
      %s88 = sphi 0, %s87
      %s104 = sphi 0, %s88
    $region4: #{tpu_custom_call.1} parent=1 // loop_header_branch
      %14 = sbr.rel (%p12) target = $region8
    $region5: #{tpu_custom_call.1} parent=1 // loop_body
      %s16 = ssub.s32 %s11, 1
      %s17 = ssub.s32 %s11, 2
      %s24 = sadd.s32 1, %s19
      %p25 = scmp.ge.s32.totalorder %s24, 2
      %s26 = scalar_select %p25, 0, %s24
      %s27 = sadd.s32 1, %s18
      %s28 = scalar_select %p25, %s27, %s18
      %p29 = scmp.ge.s32.totalorder %s28, 1
      %s30 = scalar_select %p29, 0, %s28
      %s31 = ssub.s32 %s19, %s26
      %s32 = ssub.s32 %s18, %s30
      %s33 = sor.u32 %s31, %s32
      %p34 = scmp.eq.s32.totalorder %s33, 0
      %s36 = sadd.s32 %s35, 1
      %s37 = scalar_select %p34, %s35, %s36
      %p40 = pneg %p34
      %p41 = scmp.eq.s32.totalorder %s11, 1
      %p42 = por %p40, %p41
      %p43 = scmp.ne.s32.totalorder %s35, %s38
      %p44 = scmp.eq.s32.totalorder %s11, 0
      %p45 = por %p43, %p44
      %p46 = scmp.ne.s32.totalorder %s35, %s38
      %p47 = scmp.eq.s32.totalorder %s16, 1
      %p48 = por %p46, %p47
      %p49 = scmp.ne.s32.totalorder %s38, %s39
      %p50 = scmp.eq.s32.totalorder %s16, 0
      %p51 = por %p49, %p50
      %p52 = scmp.ne.s32.totalorder %s38, %s39
      %p53 = scmp.eq.s32.totalorder %s17, 1
      %p54 = por %p52, %p53
      %p56 = scmp.ne.s32.totalorder %s39, %s55
      %p57 = scmp.eq.s32.totalorder %s17, 0
      %p58 = por %p56, %p57
      %s60 = sadd.s32 %s59, 1
      %p63 = scmp.eq.s32.totalorder %s11, 1
      %p64 = scmp.ne.s32.totalorder %s59, %s61
      %p65 = scmp.eq.s32.totalorder %s11, 0
      %p66 = por %p64, %p65
      %p67 = scmp.ne.s32.totalorder %s59, %s61
      %p68 = scmp.eq.s32.totalorder %s16, 1
      %p69 = por %p67, %p68
      %p70 = scmp.ne.s32.totalorder %s61, %s62
      %p71 = scmp.eq.s32.totalorder %s16, 0
      %p72 = por %p70, %p71
      %p73 = scmp.ne.s32.totalorder %s61, %s62
      %p74 = scmp.eq.s32.totalorder %s17, 1
      %p75 = por %p73, %p74
      %p77 = scmp.ne.s32.totalorder %s62, %s76
      %p78 = scmp.eq.s32.totalorder %s17, 0
      %p79 = por %p77, %p78
      %s80 = ssub.s32 %s19, %s26
      %s81 = ssub.s32 %s18, %s30
      %s82 = sor.u32 %s80, %s81
      %p83 = scmp.eq.s32.totalorder %s82, 0
      %s85 = sadd.s32 %s84, 1
      %s86 = scalar_select %p83, %s84, %s85
      %p89 = pneg %p83
      %p90 = scmp.eq.s32.totalorder %s11, 1
      %p91 = por %p89, %p90
      %p92 = scmp.ne.s32.totalorder %s84, %s87
      %p93 = scmp.eq.s32.totalorder %s11, 0
      %p94 = por %p92, %p93
      %p95 = scmp.ne.s32.totalorder %s84, %s87
      %p96 = scmp.eq.s32.totalorder %s16, 1
      %p97 = por %p95, %p96
      %p98 = scmp.ne.s32.totalorder %s87, %s88
      %p99 = scmp.eq.s32.totalorder %s16, 0
      %p100 = por %p98, %p99
      %p101 = scmp.ne.s32.totalorder %s87, %s88
      %p102 = scmp.eq.s32.totalorder %s17, 1
      %p103 = por %p101, %p102
      %p105 = scmp.ne.s32.totalorder %s88, %s104
      %p106 = scmp.eq.s32.totalorder %s17, 0
      %p107 = por %p105, %p106
      %p108 = scmp.le.s32.totalorder 1, %s11
      %p109 = scmp.lt.s32.totalorder %s11, 3
      %p110 = pnand %p108, %p109
      %p111 = pneg %p110
      // Predicated region
      $region9: #{tpu_custom_call.1} parent=5 // pred_check
        _
      $region10: #{tpu_custom_call.1} parent=5 // pred_check_branch
        %113 = sbr.rel (%p110) target = $region12
      $region11: #{tpu_custom_call.1} parent=5 // pred_region
        %s114 = ssub.s32 %s11, 1
        // Predicated region
        $region13: #{tpu_custom_call.1} parent=11 // pred_check
          %p115 = pneg %p72
        $region14: #{tpu_custom_call.1} parent=11 // pred_check_branch
          %117 = sbr.rel (%p115) target = $region16
        $region15: #{tpu_custom_call.1} parent=11 // pred_region
          _
        $region16: #{tpu_custom_call.1} parent=11 // pred_fallthru
          _
      $region12: #{tpu_custom_call.1} parent=5 // pred_fallthru
        _
      %p118 = scmp.lt.s32.totalorder %s11, 2
      // Predicated region
      $region17: #{tpu_custom_call.1} parent=5 // pred_check
        %p119 = pneg %p118
      $region18: #{tpu_custom_call.1} parent=5 // pred_check_branch
        %121 = sbr.rel (%p119) target = $region20
      $region19: #{tpu_custom_call.1} parent=5 // pred_region
        // Predicated region
        $region21: #{tpu_custom_call.1} parent=19 // pred_check
          %p122 = pneg %p45
        $region22: #{tpu_custom_call.1} parent=19 // pred_check_branch
          %124 = sbr.rel (%p122) target = $region24
        $region23: #{tpu_custom_call.1} parent=19 // pred_region
          %p125 = scmp.lt.s32.totalorder %s19, 1
          %s126 = scalar_select %p125, %s19, 1
          %p127 = scmp.lt.s32.totalorder %s18, 0
          %s128 = scalar_select %p127, %s18, 0
          %s129 = smul.addr %s126, 2
          %s130 = sadd.s32 %s128, %s129
          %s131 = smul.addr %s130, 4
          %s132 = scalar_lea.vmem %s0, %s131
        $region24: #{tpu_custom_call.1} parent=19 // pred_fallthru
          _
      $region20: #{tpu_custom_call.1} parent=5 // pred_fallthru
        _
      %p133 = scmp.le.s32.totalorder 1, %s11
      %p134 = scmp.lt.s32.totalorder %s11, 3
      %p135 = pnand %p133, %p134
      %p136 = pneg %p135
      // Predicated region
      $region25: #{tpu_custom_call.1} parent=5 // pred_check
        _
      $region26: #{tpu_custom_call.1} parent=5 // pred_check_branch
        %138 = sbr.rel (%p135) target = $region28
      $region27: #{tpu_custom_call.1} parent=5 // pred_region
        %s139 = ssub.s32 %s11, 1
        %p140 = scmp.lt.s32.totalorder %s21, 1
        %s141 = scalar_select %p140, %s21, 1
        %p142 = scmp.lt.s32.totalorder %s20, 0
        %s143 = scalar_select %p142, %s20, 0
        %s144 = smul.addr %s141, 2
        %s145 = sadd.s32 %s143, %s144
        %s146 = smul.addr %s145, 4
        %s147 = scalar_lea.vmem %s0, %s146
        %p148 = pneg %p51
        %p149 = pneg %p48
        %p150 = pneg %p72
        %p151 = pneg %p69
        %p152 = pneg %p100
        %p153 = pneg %p97
        %s154 = sand.u32 %s87, 1
        %s155 = scalar_lea.sflag [#allocation3], %s154
        %s156 = sand.u32 %s87, 1
        %s157 = smul.addr %s156, 16
        %s158 = scalar_lea.vmem [#allocation2], %s157
        %p159 = scmp.lt.s32.totalorder %s21, 1
        %s160 = scalar_select %p159, %s21, 1
        %p161 = scmp.lt.s32.totalorder %s20, 0
        %s162 = scalar_select %p161, %s20, 0
        %s163 = smul.addr %s160, 2
        %s164 = sadd.s32 %s162, %s163
        %s165 = smul.addr %s164, 4
        %s166 = scalar_lea.vmem %s0, %s165
        %v168 = vld [vmem:[%s1] sm:$0xf]
        %v169 = vld [vmem:[%s1 + $0x4] sm:$0xf]
        %v170 = vld [vmem:[%s1 + $0x8] sm:$0xf]
        %v171 = vld [vmem:[%s1 + $0xc] sm:$0xf]
        %v172 = vld [vmem:[%s166] sm:$0xf]
        %v173 = vld [vmem:[%s166 + $0x4] sm:$0xf]
        %v178 = vunpack.c.l.b16 %v168
        %v179 = vunpack.c.l.b16 %v169
        %v180 = vunpack.c.l.b16 %v170
        %v181 = vunpack.c.l.b16 %v171
        %v182 = vpack.c.b16 %v179, %v178
        %v183 = vpack.c.b16 %v181, %v180
        %v186 = vunpack.c.l.b16 %v172
        %v187 = vunpack.c.l.b16 %v173
        %v188 = vpack.c.b16 %v187, %v186
        %vm190 = vcmask 130048
        %v192 = vsel %vm190, %v182, 0
        %v195 = vsel %vm190, %v183, 0
        %197 = vmatprep.subr.bf16.mxu0 0
        %198 = vmatpush1.bf16.msra.mxu0 0
        %199 = vmatprep.subr.bf16.mxu0 0
        %200 = vmatpush1.bf16.msra.mxu0 0
        %201 = vmatprep.subr.bf16.mxu0 0
        %202 = vmatpush1.bf16.msra.mxu0 0
        %203 = vmatprep.subr.bf16.mxu0 0
        %204 = vmatpush1.bf16.msra.mxu0 0
        %205 = vmatprep.subr.bf16.mxu0 0
        %206 = vmatpush1.bf16.msra.mxu0 0
        %207 = vmatprep.subr.bf16.mxu0 0
        %208 = vmatpush1.bf16.msra.mxu0 0
        %209 = vmatprep.subr.bf16.mxu0 0
        %210 = vmatpush1.bf16.msra.mxu0 0
        %211 = vmatprep.subr.bf16.mxu0 0
        %212 = vmatpush1.bf16.msra.mxu0 %v188
        %213 = vmatprep.subr.bf16.mxu0 0
        %214 = vmatpush2.bf16.msra.mxu0 0
        %215 = vmatprep.subr.bf16.mxu0 0
        %216 = vmatpush2.bf16.msra.mxu0 0
        %217 = vmatprep.subr.bf16.mxu0 0
        %218 = vmatpush2.bf16.msra.mxu0 0
        %219 = vmatprep.subr.bf16.mxu0 0
        %220 = vmatpush2.bf16.msra.mxu0 0
        %221 = vmatprep.subr.bf16.mxu0 0
        %222 = vmatpush2.bf16.msra.mxu0 0
        %223 = vmatprep.subr.bf16.mxu0 0
        %224 = vmatpush2.bf16.msra.mxu0 0
        %225 = vmatprep.subr.bf16.mxu0 0
        %226 = vmatpush2.bf16.msra.mxu0 0
        %227 = vmatprep.subr.bf16.mxu0 0
        %228 = vmatpush2.bf16.msra.mxu0 0
        %229 = vmatprep.mubr.bf16.mxu0 0
        %230 = vmatmul.mubr.bf16.gmra.mxu0 %v192
        %v231 = vpop.f32.mrf.mxu0
        %v232 = vadd.f32 0.0, %v231
        %v233 = vpop.f32.mrf.mxu0
        %v234 = vpop.f32.mrf.mxu0
        %v235 = vadd.f32 0.0, %v234
        %v236 = vpop.f32.mrf.mxu0
        %237 = vmatprep.mubr.bf16.mxu0 0
        %238 = vmatmul.mubr.bf16.gmra.mxu0 %v195
        %v239 = vpop.f32.mrf.mxu0
        %v240 = vadd.f32 0.0, %v239
        %v241 = vpop.f32.mrf.mxu0
        %v242 = vpop.f32.mrf.mxu0
        %v243 = vadd.f32 0.0, %v242
        %v244 = vpop.f32.mrf.mxu0
        %245 = vdwg.mxu0
        %v246 = vpack.c.bf16 %v235, %v232
        %v247 = vpack.c.bf16 %v243, %v240
        %v250 = vunpack.c.l.b16 %v246
        %v251 = vunpack.c.h.b16 %v246
        %v252 = vunpack.c.l.b16 %v247
        %v253 = vunpack.c.h.b16 %v247
        %v254 = vpack.c.b16 %v250, %v250
        %v255 = vpack.c.b16 %v251, %v251
        %v256 = vpack.c.b16 %v252, %v252
        %v257 = vpack.c.b16 %v253, %v253
        %vm262 = vcmask 519168
        %263 = vst.msk [vmem:[%s158] sm:$0xf] %vm262, %v254
        %264 = vst.msk [vmem:[%s158 + $0x4] sm:$0xf] %vm262, %v255
        %265 = vst.msk [vmem:[%s158 + $0x8] sm:$0xf] %vm262, %v256
        %266 = vst.msk [vmem:[%s158 + $0xc] sm:$0xf] %vm262, %v257
        %s267 = sand.u32 %s87, 1
        %s268 = scalar_lea.sflag [#allocation3], %s267
        %s269 = sand.u32 %s87, 1
        %s270 = smul.addr %s269, 16
        %s271 = scalar_lea.vmem [#allocation2], %s270
        // Predicated region
        $region29: #{tpu_custom_call.1} parent=27 // pred_check
          %p272 = pneg %p97
        $region30: #{tpu_custom_call.1} parent=27 // pred_check_branch
          %274 = sbr.rel (%p272) target = $region32
        $region31: #{tpu_custom_call.1} parent=27 // pred_region
          %s276 = ssub.s32 256, 256
          %277 = vsyncadd %s268, %s276
          %s278 = smul.addr %s21, 4
          %s279 = sadd.s32 %s20, %s278
          %s280 = smul.addr %s279, 64
          %s281 = scalar_lea.hbm %s2, %s280
          %s282 = sshll.u32 %s271, 4
          %s283 = int_to_ptr.vmem [resolvable:$true] %s282
          %288 = dma.vmem_to_hbm [thread:$0]  %s283, 256, %s281, %s268, 64, 64, 4
        $region32: #{tpu_custom_call.1} parent=27 // pred_fallthru
          _
      $region28: #{tpu_custom_call.1} parent=5 // pred_fallthru
        _
      %p289 = scmp.le.s32.totalorder 2, %s11
      // Predicated region
      $region33: #{tpu_custom_call.1} parent=5 // pred_check
        %p290 = pneg %p289
      $region34: #{tpu_custom_call.1} parent=5 // pred_check_branch
        %292 = sbr.rel (%p290) target = $region36
      $region35: #{tpu_custom_call.1} parent=5 // pred_region
        %s293 = ssub.s32 %s11, 2
        // Predicated region
        $region37: #{tpu_custom_call.1} parent=35 // pred_check
          %p294 = pneg %p103
        $region38: #{tpu_custom_call.1} parent=35 // pred_check_branch
          %296 = sbr.rel (%p294) target = $region40
        $region39: #{tpu_custom_call.1} parent=35 // pred_region
          %s297 = sand.u32 %s88, 1
          %s298 = scalar_lea.sflag [#allocation3], %s297
          %s299 = sand.u32 %s88, 1
          %s300 = smul.addr %s299, 16
          %s301 = scalar_lea.vmem [#allocation2], %s300
          %302 = dma.done %s298, 256
        $region40: #{tpu_custom_call.1} parent=35 // pred_fallthru
          _
      $region36: #{tpu_custom_call.1} parent=5 // pred_fallthru
        _
    $region6: #{tpu_custom_call.1} parent=1 // loop_footer
      %s15 = sadd.s32 1, %s11
    $region7: #{tpu_custom_call.1} parent=1 // loop_footer_branch
      %10 = sbr.rel target = $region3
    $region8: #{tpu_custom_call.1} parent=1 // loop_exit
      _
    %303 = vsyncpa [#allocation3], 1
    %s304 = scalar_lea.sflag [#allocation3], 1
    %305 = vsyncpa %s304, 1

</llo_original>
